<compile_context>
chip_gen: v5e
topology: v5e:2x2
jax: 0.10.0
libtpu: 0.0.40
codegen_flags: <defaults>
</compile_context>

<pallas_src>
import struct

import jax
import jax.numpy as jnp
from jax.experimental import pallas as pl
from jax.experimental.pallas import tpu as pltpu


def _constant_scalar_kernel(value_ref, out_ref):
    # value_ref: (1,) f32 in SMEM.  out_ref: (1,) f32 in SMEM.
    # Pure scalar copy — no VPU splat, no VMEM tile, no HBM writeback of a
    # full vreg just to read back 4 bytes.
    out_ref[0] = value_ref[0]


# One compiled kernel shared by every segment / every value (the value is a
# runtime SMEM operand, so there is no per-value Mosaic recompile).
_constant_call = pl.pallas_call(
    _constant_scalar_kernel,
    out_shape=jax.ShapeDtypeStruct((1,), jnp.float32),
    in_specs=[pl.BlockSpec(memory_space=pltpu.SMEM)],
    out_specs=pl.BlockSpec(memory_space=pltpu.SMEM),
)


@jax.jit
def _materialize_constant(value_arr):
    # Fuse the pallas_call + 0-d extraction into a single dispatch.
    return _constant_call(value_arr)[0]


# Module-level cache: f32 bit pattern -> cached 0-d device scalar.  Dedupes
# across instances (N segments sharing a value => one materialization) and is
# NaN-safe (bit-pattern key, never a float != compare).
_CONSTANT_CACHE: dict[int, jax.Array] = {}


def _f32_bits(value: float) -> int:
    return struct.unpack("<I", struct.pack("<f", float(value)))[0]


class WeightScheduleSegment:
    def __init__(self, end_point: float):
        self.end_point = float(end_point)

    def forward(self, progress):
        raise NotImplementedError()

    __call__ = forward


class ConstantWeightScheduleSegment(WeightScheduleSegment):
    """JAX/Pallas port of ConstantWeightScheduleSegment."""

    def __init__(self, end_point: float, value: float):
        super().__init__(end_point)
        self._value = float(value)

    def _materialize(self) -> jax.Array:
        key = _f32_bits(self._value)
        cached = _CONSTANT_CACHE.get(key)
        if cached is None:
            value_arr = jnp.asarray([self._value], dtype=jnp.float32)
            cached = _materialize_constant(value_arr)  # 0-d f32 device scalar
            _CONSTANT_CACHE[key] = cached
        return cached

    def forward(self, progress) -> jax.Array:
        # `progress` is accepted (to mirror forward(progress)) but deliberately
        # not transferred to device or read: the result never depends on it.
        del progress
        return self._materialize()

    __call__ = forward

    def __repr__(self):
        return "ConstantWeightScheduleSegment({}, {})".format(
            self.end_point, self._value
        )


if __name__ == "__main__":
    # Deterministic "parameters": end_point and value are constructor args
    # (the module has no tensor weights).
    end_point = 0.75
    value = 3.5
    seg = ConstantWeightScheduleSegment(end_point, value)

    # Deterministic example input for `progress` (unused by the math, exactly
    # as in the PyTorch module).
    key = jax.random.PRNGKey(0)
    progress = jax.random.uniform(key, (), dtype=jnp.float32)

    out = jax.block_until_ready(seg(progress))

    expected = jnp.float32(value)
    assert out.shape == ()
    assert out.dtype == jnp.float32
    assert jnp.allclose(out, expected), (out, expected)

    # Second call exercises the cached path (no new dispatch) and stays correct.
    out2 = jax.block_until_ready(seg(progress + 0.1))
    assert jnp.allclose(out2, expected), (out2, expected)

    # A second instance with the same value reuses the module-level cache
    # (same device buffer, no extra materialization).
    seg_b = ConstantWeightScheduleSegment(0.25, value)
    out3 = jax.block_until_ready(seg_b(progress))
    assert jnp.allclose(out3, expected), (out3, expected)

    print("KERNEL_OK")
</pallas_src>

<mosaic_0001>
module attributes {stable_mosaic.version = 11 : i64} {
  func.func @_constant_scalar_kernel(%arg0: memref<1xf32, #tpu.memory_space<smem>>, %arg1: memref<1xf32, #tpu.memory_space<smem>>) attributes {dimension_semantics = [], scalar_prefetch = 0 : i64, scratch_operands = 0 : i64, tpu.core_type = #tpu.core_type<tc>} {
    %c0 = arith.constant 0 : index
    %0 = memref.load %arg0[%c0] : memref<1xf32, #tpu.memory_space<smem>>
    %c0_0 = arith.constant 0 : index
    %1 = memref.load %arg1[%c0_0] : memref<1xf32, #tpu.memory_space<smem>>
    memref.store %0, %arg1[%c0_0] : memref<1xf32, #tpu.memory_space<smem>>
    return
  }
}

</mosaic_0001>

<llo_original>
// kernel: _materialize_constant.1
$region0: #{_materialize_constant.1}
  #allocation0 [shape = 'u32[]', space=smem, size = 0x4, offset = 0x4, fixed_abs, tag = 'smem constant byte address 0x4 - core index']
  #allocation1 [shape = 'u32[72,128]{1,0:T(1,128)}', space=vmem, size = 0x9000, scoped, tag = 'internal scratch']
  #allocation2 [shape = 'f32[1]{0:T(128)S(6)}', space=smem, size = 0x200, scoped, tag = 'scoped memory for _materialize_constant.1']
  %s0 = inlined_call_operand.<no memory space> [shape: f32[1], index: 0, kind: input, shape index: {}]
  %s1 = inlined_call_operand.hbm [shape: f32[1], index: 1, kind: output, shape index: {}]
  %s2 = sld [smem:[#allocation0]]
  $region14: #{_materialize_constant.1} parent=0
    _
  %s4 = ssub.s32 1, %s2
  %s5 = scalar_select 0, %s4, %s2
  %6 = sst [smem:[#allocation2]] %s0
  $region1: #{_materialize_constant.1} parent=0
    #allocation3 [shape = 'u8[512]{0}', space=smem, size = 0x200, scoped, tag = 'output window, operand 0, single buffered']
    #allocation4 [shape = 's32[1]{0}', space=sflag, size = 0x4, scoped, tag = 'scoped memory for _materialize_constant.1']
    %7 = vsyncpa [#allocation4], 0
    // Predicated region
    $region2: #{_materialize_constant.1} parent=1 // pred_check
      _
    $region3: #{_materialize_constant.1} parent=1 // pred_check_branch
      %9 = sbr.rel (0) target = $region5
    $region4: #{_materialize_constant.1} parent=1 // pred_region
      _
    $region5: #{_materialize_constant.1} parent=1 // pred_fallthru
      _
    %s10 = sld [smem:[#allocation2]]
    %s11 = scalar_lea.smem [#allocation3], 0
    %12 = sst [smem:[%s11]] %s10
    // Predicated region
    $region6: #{_materialize_constant.1} parent=1 // pred_check
      _
    $region7: #{_materialize_constant.1} parent=1 // pred_check_branch
      %14 = sbr.rel (0) target = $region9
    $region8: #{_materialize_constant.1} parent=1 // pred_region
      %16 = vsyncadd [#allocation4], 0
      %s18 = sshll.u32 %s1, 4
      %s19 = int_to_ptr.hbm [resolvable:$true] %s18
      %21 = dma.smem_to_hbm [#allocation3], 16, %s19, [#allocation4]
    $region9: #{_materialize_constant.1} parent=1 // pred_fallthru
      _
    // Predicated region
    $region10: #{_materialize_constant.1} parent=1 // pred_check
      _
    $region11: #{_materialize_constant.1} parent=1 // pred_check_branch
      %23 = sbr.rel (0) target = $region13
    $region12: #{_materialize_constant.1} parent=1 // pred_region
      %25 = dma.done [#allocation4], 16
    $region13: #{_materialize_constant.1} parent=1 // pred_fallthru
      _
    %26 = sfence
    %27 = vsyncpa [#allocation4], 1

</llo_original>
